<compile_context>
chip_gen: v7x
topology: tpu7x:2x2x1
jax: 0.10.0
libtpu: 0.0.40
codegen_flags: <defaults>
</compile_context>

<pallas_src>
import jax
import jax.numpy as jnp
from jax import lax
from jax.experimental import pallas as pl
from jax.experimental.pallas import tpu as pltpu


def dan_kernel(x_ref, vw_ref, vb_ref, ww_ref, wb_ref, out_ref):
    # x_ref : [TB, S, E] bf16      vw_ref: [Hp, E] bf16 (pre-scaled by 1/S)
    # vb_ref: [1, Hp]    f32       ww_ref: [Cp, Hp] bf16
    # wb_ref: [1, Cp]    f32       out_ref: [TB, Cp] f32
    S = x_ref.shape[1]

    # Sequence reduction: accumulate slice-by-slice in f32 so we never
    # materialize a full f32 copy of the [TB, S, E] tile.
    acc = x_ref[:, 0, :].astype(jnp.float32)                 # [TB, E]
    for s in range(1, S):                                    # S is small & static
        acc = acc + x_ref[:, s, :].astype(jnp.float32)
    # TODO(synk): the module divides by len(x); here 1/S is folded into V_w, so
    # variable-length / padded sequences need a per-example length mask instead.

    # hidden = ReLU(sum_x @ (V_w/S)^T + V_b); contract E (last axis of both).
    h = lax.dot_general(
        acc.astype(jnp.bfloat16), vw_ref[...],
        dimension_numbers=(((1,), (1,)), ((), ())),
        preferred_element_type=jnp.float32) + vb_ref[...]    # [TB, Hp]
    h = jnp.maximum(h, 0.0)

    # logits = h @ W_w^T + W_b; padded classes have -1e30 bias -> zero prob.
    logits = lax.dot_general(
        h.astype(jnp.bfloat16), ww_ref[...],
        dimension_numbers=(((1,), (1,)), ((), ())),
        preferred_element_type=jnp.float32) + wb_ref[...]    # [TB, Cp]

    # numerically stable softmax over the (padded) class axis
    m = jnp.max(logits, axis=1, keepdims=True)
    e = jnp.exp(logits - m)
    out_ref[...] = e / jnp.sum(e, axis=1, keepdims=True)


def _pick_batch_tile(B, S, E):
    """Largest batch tile that divides B, fits a conservative VMEM budget
    (sized for v7x's 32 MiB scoped default), and keeps sublane alignment."""
    row_bytes = S * E * 2                       # one bf16 example of the x block
    budget = 24 << 20                           # headroom vs. 32 MiB scoped VMEM
    cap = max(8, budget // (2 * row_bytes + E * 4))   # 2x-buffered x + f32 acc row
    limit = min(B, 512, cap)
    tb = max((d for d in range(1, limit + 1)
              if B % d == 0 and (d % 8 == 0 or d == B)), default=B)
    # Prefer an even grid length (both v7x TensorCores) once the tile is large.
    if B // tb == 1 and tb >= 256 and tb % 2 == 0:
        tb //= 2
    return tb


def dan_forward(x, V_w, V_b, W_w, W_b, *, tb=None):
    """Batched DAN forward.

    x:   [B, S, E] stacked word embeddings for B examples.
    V_w: [H, E], V_b: [H], W_w: [C, H], W_b: [C]  (PyTorch nn.Linear layout).
    Returns softmax probabilities [B, C]; row b equals module.forward(x[b]).
    """
    B, S, E = x.shape
    H = V_w.shape[0]
    C = W_w.shape[0]
    Hp = ((H + 127) // 128) * 128               # lane-dense padded hidden dim
    Cp = ((C + 127) // 128) * 128               # lane-dense padded class dim

    if tb is None:
        tb = _pick_batch_tile(B, S, E)
    tb = min(tb, B)
    assert B % tb == 0, "batch must be divisible by the batch tile"
    assert tb % 8 == 0 or tb == B, "batch tile must be sublane-aligned or full"

    inv_s = jnp.float32(1.0 / S)
    x_bf = jnp.asarray(x, jnp.bfloat16)

    # Fold 1/S into V_w (one-time constant transform) and pad H -> Hp, C -> Cp.
    vw = jnp.zeros((Hp, E), jnp.float32).at[:H].set(
        jnp.asarray(V_w, jnp.float32) * inv_s).astype(jnp.bfloat16)     # [Hp, E]
    vb = jnp.zeros((1, Hp), jnp.float32).at[0, :H].set(
        jnp.asarray(V_b, jnp.float32))                                  # [1, Hp]
    ww = jnp.zeros((Cp, Hp), jnp.float32).at[:C, :H].set(
        jnp.asarray(W_w, jnp.float32)).astype(jnp.bfloat16)             # [Cp, Hp]
    wb = jnp.full((1, Cp), -1e30, jnp.float32).at[0, :C].set(
        jnp.asarray(W_b, jnp.float32))                                  # [1, Cp]

    resident = pl.Buffered(buffer_count=1)      # constant index map -> DMA once
    out_padded = pl.pallas_call(
        dan_kernel,
        out_shape=jax.ShapeDtypeStruct((B, Cp), jnp.float32),
        grid=(B // tb,),
        in_specs=[
            pl.BlockSpec((tb, S, E), lambda b: (b, 0, 0)),   # streamed per step
            pl.BlockSpec((Hp, E), lambda b: (0, 0), pipeline_mode=resident),
            pl.BlockSpec((1, Hp), lambda b: (0, 0), pipeline_mode=resident),
            pl.BlockSpec((Cp, Hp), lambda b: (0, 0), pipeline_mode=resident),
            pl.BlockSpec((1, Cp), lambda b: (0, 0), pipeline_mode=resident),
        ],
        out_specs=pl.BlockSpec((tb, Cp), lambda b: (b, 0)),  # lane-dense stores
        compiler_params=pltpu.CompilerParams(
            dimension_semantics=("parallel",),
            vmem_limit_bytes=32 << 20),
    )(x_bf, vw, vb, ww, wb)
    return out_padded[:, :C]


def dan_reference(x, V_w, V_b, W_w, W_b):
    """Pure-JAX reference mirroring the kernel's bf16-operand / f32-accumulate
    math (including the 1/S fold into V_w)."""
    S = x.shape[1]
    q = lambda a: jnp.asarray(a, jnp.bfloat16).astype(jnp.float32)
    sum_x = jnp.sum(q(x), axis=1)
    vw_s = q(jnp.asarray(V_w, jnp.float32) * (1.0 / S))
    h = jnp.maximum(q(sum_x) @ vw_s.T + V_b, 0.0)
    logits = q(h) @ q(W_w).T + W_b
    return jax.nn.softmax(logits, axis=1)


def dan_module_reference(x, V_w, V_b, W_w, W_b):
    """Exact f32 math of the PyTorch module (per-example average -> V -> ReLU
    -> W -> softmax)."""
    avg = jnp.mean(x, axis=1)
    h = jnp.maximum(avg @ V_w.T + V_b, 0.0)
    logits = h @ W_w.T + W_b
    return jax.nn.softmax(logits, axis=1)


if __name__ == "__main__":
    # Small shapes consistent with the module:
    #   batch=16 examples, seq_len=8, emb_dim=128, n_hidden_units=32, n_classes=4
    B, S, E, H, C = 16, 8, 128, 32, 4

    key = jax.random.PRNGKey(0)
    kx, kvw, kvb, kww, kwb = jax.random.split(key, 5)

    x = jax.random.normal(kx, (B, S, E), dtype=jnp.float32)           # stacked word embeddings
    V_w = jax.random.normal(kvw, (H, E), dtype=jnp.float32) * 0.05    # nn.Linear(emb_dim, n_hidden)
    V_b = jax.random.normal(kvb, (H,), dtype=jnp.float32) * 0.05
    W_w = jax.random.normal(kww, (C, H), dtype=jnp.float32) * 0.05    # nn.Linear(n_hidden, n_classes)
    W_b = jax.random.normal(kwb, (C,), dtype=jnp.float32) * 0.05

    out = dan_forward(x, V_w, V_b, W_w, W_b)       # toy case -> tb=B, grid=(1,)
    out = jax.block_until_ready(out)

    ref = dan_reference(x, V_w, V_b, W_w, W_b)
    ref_f32 = dan_module_reference(x, V_w, V_b, W_w, W_b)
    assert out.shape == (B, C)
    assert jnp.allclose(out, ref, atol=2e-4, rtol=2e-4), (out, ref)
    assert jnp.allclose(out, ref_f32, atol=5e-3), (out, ref_f32)
    assert jnp.allclose(jnp.sum(out, axis=1), 1.0, atol=1e-4)

    print("KERNEL_OK")
</pallas_src>

<mosaic_0001>
module attributes {stable_mosaic.version = 11 : i64} {
  func.func @dan_kernel(%arg0: i32, %arg1: memref<16x8x128xbf16, #tpu.memory_space<vmem>>, %arg2: memref<128x128xbf16, #tpu.memory_space<vmem>>, %arg3: memref<1x128xf32, #tpu.memory_space<vmem>>, %arg4: memref<128x128xbf16, #tpu.memory_space<vmem>>, %arg5: memref<1x128xf32, #tpu.memory_space<vmem>>, %arg6: memref<16x128xf32, #tpu.memory_space<vmem>>) attributes {dimension_semantics = [#tpu.dimension_semantics<parallel>], iteration_bounds = array<i64: 1>, scalar_prefetch = 0 : i64, scratch_operands = 0 : i64, tpu.core_type = #tpu.core_type<tc>, window_params = [{transform_indices = @transform_0, window_bounds = array<i64: 16, 8, 128>}, {pipeline_mode = #tpu.pipeline_mode<synchronous>, transform_indices = @transform_1, window_bounds = array<i64: 128, 128>}, {pipeline_mode = #tpu.pipeline_mode<synchronous>, transform_indices = @transform_2, window_bounds = array<i64: 1, 128>}, {pipeline_mode = #tpu.pipeline_mode<synchronous>, transform_indices = @transform_3, window_bounds = array<i64: 128, 128>}, {pipeline_mode = #tpu.pipeline_mode<synchronous>, transform_indices = @transform_4, window_bounds = array<i64: 1, 128>}, {transform_indices = @transform_5, window_bounds = array<i64: 16, 128>}]} {
    %c0 = arith.constant 0 : index
    %c0_0 = arith.constant 0 : index
    %c0_1 = arith.constant 0 : index
    %0 = vector.load %arg1[%c0, %c0_0, %c0_1] : memref<16x8x128xbf16, #tpu.memory_space<vmem>>, vector<16x1x128xbf16>
    %1 = vector.shape_cast %0 : vector<16x1x128xbf16> to vector<16x128xbf16>
    %2 = arith.extf %1 : vector<16x128xbf16> to vector<16x128xf32>
    %c0_2 = arith.constant 0 : index
    %c1 = arith.constant 1 : index
    %c0_3 = arith.constant 0 : index
    %3 = vector.load %arg1[%c0_2, %c1, %c0_3] : memref<16x8x128xbf16, #tpu.memory_space<vmem>>, vector<16x1x128xbf16>
    %4 = vector.shape_cast %3 : vector<16x1x128xbf16> to vector<16x128xbf16>
    %5 = arith.extf %4 : vector<16x128xbf16> to vector<16x128xf32>
    %6 = arith.addf %2, %5 : vector<16x128xf32>
    %c0_4 = arith.constant 0 : index
    %c2 = arith.constant 2 : index
    %c0_5 = arith.constant 0 : index
    %7 = vector.load %arg1[%c0_4, %c2, %c0_5] : memref<16x8x128xbf16, #tpu.memory_space<vmem>>, vector<16x1x128xbf16>
    %8 = vector.shape_cast %7 : vector<16x1x128xbf16> to vector<16x128xbf16>
    %9 = arith.extf %8 : vector<16x128xbf16> to vector<16x128xf32>
    %10 = arith.addf %6, %9 : vector<16x128xf32>
    %c0_6 = arith.constant 0 : index
    %c3 = arith.constant 3 : index
    %c0_7 = arith.constant 0 : index
    %11 = vector.load %arg1[%c0_6, %c3, %c0_7] : memref<16x8x128xbf16, #tpu.memory_space<vmem>>, vector<16x1x128xbf16>
    %12 = vector.shape_cast %11 : vector<16x1x128xbf16> to vector<16x128xbf16>
    %13 = arith.extf %12 : vector<16x128xbf16> to vector<16x128xf32>
    %14 = arith.addf %10, %13 : vector<16x128xf32>
    %c0_8 = arith.constant 0 : index
    %c4 = arith.constant 4 : index
    %c0_9 = arith.constant 0 : index
    %15 = vector.load %arg1[%c0_8, %c4, %c0_9] : memref<16x8x128xbf16, #tpu.memory_space<vmem>>, vector<16x1x128xbf16>
    %16 = vector.shape_cast %15 : vector<16x1x128xbf16> to vector<16x128xbf16>
    %17 = arith.extf %16 : vector<16x128xbf16> to vector<16x128xf32>
    %18 = arith.addf %14, %17 : vector<16x128xf32>
    %c0_10 = arith.constant 0 : index
    %c5 = arith.constant 5 : index
    %c0_11 = arith.constant 0 : index
    %19 = vector.load %arg1[%c0_10, %c5, %c0_11] : memref<16x8x128xbf16, #tpu.memory_space<vmem>>, vector<16x1x128xbf16>
    %20 = vector.shape_cast %19 : vector<16x1x128xbf16> to vector<16x128xbf16>
    %21 = arith.extf %20 : vector<16x128xbf16> to vector<16x128xf32>
    %22 = arith.addf %18, %21 : vector<16x128xf32>
    %c0_12 = arith.constant 0 : index
    %c6 = arith.constant 6 : index
    %c0_13 = arith.constant 0 : index
    %23 = vector.load %arg1[%c0_12, %c6, %c0_13] : memref<16x8x128xbf16, #tpu.memory_space<vmem>>, vector<16x1x128xbf16>
    %24 = vector.shape_cast %23 : vector<16x1x128xbf16> to vector<16x128xbf16>
    %25 = arith.extf %24 : vector<16x128xbf16> to vector<16x128xf32>
    %26 = arith.addf %22, %25 : vector<16x128xf32>
    %c0_14 = arith.constant 0 : index
    %c7 = arith.constant 7 : index
    %c0_15 = arith.constant 0 : index
    %27 = vector.load %arg1[%c0_14, %c7, %c0_15] : memref<16x8x128xbf16, #tpu.memory_space<vmem>>, vector<16x1x128xbf16>
    %28 = vector.shape_cast %27 : vector<16x1x128xbf16> to vector<16x128xbf16>
    %29 = arith.extf %28 : vector<16x128xbf16> to vector<16x128xf32>
    %30 = arith.addf %26, %29 : vector<16x128xf32>
    %31 = arith.truncf %30 : vector<16x128xf32> to vector<16x128xbf16>
    %c0_16 = arith.constant 0 : index
    %c0_17 = arith.constant 0 : index
    %32 = vector.load %arg2[%c0_16, %c0_17] : memref<128x128xbf16, #tpu.memory_space<vmem>>, vector<128x128xbf16>
    %cst = arith.constant dense<0.000000e+00> : vector<16x128xf32>
    %33 = tpu.matmul %31, %32, %cst {dimension_numbers = #tpu.dot_dimension_numbers<[1], [1], [0], [0], [0, 0, 1, 0], [], []>} : vector<16x128xbf16>, vector<128x128xbf16>, vector<16x128xf32> -> vector<16x128xf32>
    %c0_18 = arith.constant 0 : index
    %c0_19 = arith.constant 0 : index
    %34 = vector.load %arg3[%c0_18, %c0_19] : memref<1x128xf32, #tpu.memory_space<vmem>>, vector<1x128xf32>
    %35 = vector.broadcast %34 : vector<1x128xf32> to vector<16x128xf32>
    %36 = arith.addf %33, %35 : vector<16x128xf32>
    %cst_20 = arith.constant 0.000000e+00 : f32
    %37 = vector.broadcast %cst_20 : f32 to vector<16x128xf32>
    %38 = arith.maximumf %36, %37 : vector<16x128xf32>
    %39 = arith.truncf %38 : vector<16x128xf32> to vector<16x128xbf16>
    %c0_21 = arith.constant 0 : index
    %c0_22 = arith.constant 0 : index
    %40 = vector.load %arg4[%c0_21, %c0_22] : memref<128x128xbf16, #tpu.memory_space<vmem>>, vector<128x128xbf16>
    %cst_23 = arith.constant dense<0.000000e+00> : vector<16x128xf32>
    %41 = tpu.matmul %39, %40, %cst_23 {dimension_numbers = #tpu.dot_dimension_numbers<[1], [1], [0], [0], [0, 0, 1, 0], [], []>} : vector<16x128xbf16>, vector<128x128xbf16>, vector<16x128xf32> -> vector<16x128xf32>
    %c0_24 = arith.constant 0 : index
    %c0_25 = arith.constant 0 : index
    %42 = vector.load %arg5[%c0_24, %c0_25] : memref<1x128xf32, #tpu.memory_space<vmem>>, vector<1x128xf32>
    %43 = vector.broadcast %42 : vector<1x128xf32> to vector<16x128xf32>
    %44 = arith.addf %41, %43 : vector<16x128xf32>
    %cst_26 = arith.constant dense<0xFF800000> : vector<16xf32>
    %45 = vector.multi_reduction <maximumf>, %44, %cst_26 [1] : vector<16x128xf32> to vector<16xf32>
    %46 = vector.shape_cast %45 : vector<16xf32> to vector<16x1xf32>
    %47 = vector.broadcast %46 : vector<16x1xf32> to vector<16x128xf32>
    %48 = arith.subf %44, %47 : vector<16x128xf32>
    %49 = math.exp %48 : vector<16x128xf32>
    %cst_27 = arith.constant dense<0.000000e+00> : vector<16xf32>
    %50 = vector.multi_reduction <add>, %49, %cst_27 [1] : vector<16x128xf32> to vector<16xf32>
    %51 = vector.shape_cast %50 : vector<16xf32> to vector<16x1xf32>
    %52 = vector.broadcast %51 : vector<16x1xf32> to vector<16x128xf32>
    %53 = arith.divf %49, %52 : vector<16x128xf32>
    %c0_28 = arith.constant 0 : index
    %c0_29 = arith.constant 0 : index
    %54 = vector.load %arg6[%c0_28, %c0_29] : memref<16x128xf32, #tpu.memory_space<vmem>>, vector<16x128xf32>
    tpu.vector_store %arg6[%c0_28, %c0_29], %53 {strides = array<i32>} : memref<16x128xf32, #tpu.memory_space<vmem>>, vector<16x128xf32>,
    return
  }
  func.func @transform_0(%arg0: i32) -> (i32, i32, i32) {
    %c0_i32 = arith.constant 0 : i32
    %c0_i32_0 = arith.constant 0 : i32
    %c0_i32_1 = arith.constant 0 : i32
    return %arg0, %c0_i32, %c0_i32_0 : i32, i32, i32
  }
  func.func @transform_1(%arg0: i32) -> (i32, i32) {
    %c0_i32 = arith.constant 0 : i32
    %c0_i32_0 = arith.constant 0 : i32
    %c0_i32_1 = arith.constant 0 : i32
    return %c0_i32, %c0_i32_0 : i32, i32
  }
  func.func @transform_2(%arg0: i32) -> (i32, i32) {
    %c0_i32 = arith.constant 0 : i32
    %c0_i32_0 = arith.constant 0 : i32
    %c0_i32_1 = arith.constant 0 : i32
    return %c0_i32, %c0_i32_0 : i32, i32
  }
  func.func @transform_3(%arg0: i32) -> (i32, i32) {
    %c0_i32 = arith.constant 0 : i32
    %c0_i32_0 = arith.constant 0 : i32
    %c0_i32_1 = arith.constant 0 : i32
    return %c0_i32, %c0_i32_0 : i32, i32
  }
  func.func @transform_4(%arg0: i32) -> (i32, i32) {
    %c0_i32 = arith.constant 0 : i32
    %c0_i32_0 = arith.constant 0 : i32
    %c0_i32_1 = arith.constant 0 : i32
    return %c0_i32, %c0_i32_0 : i32, i32
  }
  func.func @transform_5(%arg0: i32) -> (i32, i32) {
    %c0_i32 = arith.constant 0 : i32
    %c0_i32_0 = arith.constant 0 : i32
    return %arg0, %c0_i32 : i32, i32
  }
}

</mosaic_0001>

<llo_original>
// kernel: tpu_custom_call.1
$region0: #{tpu_custom_call.1}
  #allocation0 [shape = 'u32[]', space=smem, size = 0x4, offset = 0x4, fixed_abs, tag = 'smem constant byte address 0x4 - core index']
  #allocation1 [shape = 'u32[144,128]{1,0:T(1,128)}', space=vmem, size = 0x12000, scoped, tag = 'internal scratch']
  %s0 = inlined_call_operand.hbm [shape: bf16[16,8,128], index: 0, kind: input, shape index: {}]
  %s1 = inlined_call_operand.hbm [shape: bf16[128,128], index: 1, kind: input, shape index: {}]
  %s2 = inlined_call_operand.vmem [shape: f32[1,128], index: 2, kind: input, shape index: {}]
  %s3 = inlined_call_operand.hbm [shape: bf16[128,128], index: 3, kind: input, shape index: {}]
  %s4 = inlined_call_operand.vmem [shape: f32[1,128], index: 4, kind: input, shape index: {}]
  %s5 = inlined_call_operand.hbm [shape: f32[16,128], index: 5, kind: output, shape index: {}]
  %s6 = sld [smem:[#allocation0]]
  $region42: #{tpu_custom_call.1} parent=0
    _
  %s8 = ssub.s32 1, %s6
  %s9 = scalar_select 0, %s8, %s6
  $region1: #{tpu_custom_call.1} parent=0
    #allocation2 [shape = 'u8[32768]{0}', space=vmem, size = 0x8000, scoped, tag = 'input window, operand 0, single buffered']
    #allocation3 [shape = 's32[1]{0}', space=sflag, size = 0x4, scoped, tag = 'scoped memory for tpu_custom_call.1']
    #allocation4 [shape = 's32[1]{0}', space=sflag, size = 0x4, scoped, tag = 'scoped memory for tpu_custom_call.1']
    #allocation5 [shape = 'u8[32768]{0}', space=vmem, size = 0x8000, scoped, tag = 'input window, operand 1, single buffered']
    #allocation6 [shape = 's32[1]{0}', space=sflag, size = 0x4, scoped, tag = 'scoped memory for tpu_custom_call.1']
    #allocation7 [shape = 'u8[32768]{0}', space=vmem, size = 0x8000, scoped, tag = 'input window, operand 3, single buffered']
    #allocation8 [shape = 'u8[8192]{0}', space=vmem, size = 0x2000, scoped, tag = 'output window, operand 0, single buffered']
    %10 = vsyncpa [#allocation3], 0
    %11 = vsyncpa [#allocation6], 0
    %12 = vsyncpa [#allocation4], 0
    // Predicated region
    $region2: #{tpu_custom_call.1} parent=1 // pred_check
      _
    $region3: #{tpu_custom_call.1} parent=1 // pred_check_branch
      %14 = sbr.rel (0) target = $region5
    $region4: #{tpu_custom_call.1} parent=1 // pred_region
      %s16 = ssub.s32 1024, 1024
      %17 = vsyncadd [#allocation3], %s16
      %s18 = sshll.u32 [#allocation2], 4
      %s19 = int_to_ptr.vmem [resolvable:$true] %s18
      %24 = dma.hbm_to_vmem [thread:$0]  %s0, 1024, %s19, [#allocation3], 64, 64, 4
    $region5: #{tpu_custom_call.1} parent=1 // pred_fallthru
      _
    // Predicated region
    $region6: #{tpu_custom_call.1} parent=1 // pred_check
      _
    $region7: #{tpu_custom_call.1} parent=1 // pred_check_branch
      %26 = sbr.rel (0) target = $region9
    $region8: #{tpu_custom_call.1} parent=1 // pred_region
      %s28 = ssub.s32 1024, 1024
      %29 = vsyncadd [#allocation6], %s28
      %s30 = sshll.u32 [#allocation5], 4
      %s31 = int_to_ptr.vmem [resolvable:$true] %s30
      %36 = dma.hbm_to_vmem [thread:$0]  %s1, 1024, %s31, [#allocation6], 64, 64, 4
    $region9: #{tpu_custom_call.1} parent=1 // pred_fallthru
      _
    // Predicated region
    $region10: #{tpu_custom_call.1} parent=1 // pred_check
      _
    $region11: #{tpu_custom_call.1} parent=1 // pred_check_branch
      %38 = sbr.rel (0) target = $region13
    $region12: #{tpu_custom_call.1} parent=1 // pred_region
      _
    $region13: #{tpu_custom_call.1} parent=1 // pred_fallthru
      _
    // Predicated region
    $region14: #{tpu_custom_call.1} parent=1 // pred_check
      _
    $region15: #{tpu_custom_call.1} parent=1 // pred_check_branch
      %40 = sbr.rel (0) target = $region17
    $region16: #{tpu_custom_call.1} parent=1 // pred_region
      %s42 = ssub.s32 1024, 1024
      %43 = vsyncadd [#allocation6], %s42
      %s44 = sshll.u32 [#allocation7], 4
      %s45 = int_to_ptr.vmem [resolvable:$true] %s44
      %50 = dma.hbm_to_vmem [thread:$0]  %s3, 1024, %s45, [#allocation6], 64, 64, 4
    $region17: #{tpu_custom_call.1} parent=1 // pred_fallthru
      _
    // Predicated region
    $region18: #{tpu_custom_call.1} parent=1 // pred_check
      _
    $region19: #{tpu_custom_call.1} parent=1 // pred_check_branch
      %52 = sbr.rel (0) target = $region21
    $region20: #{tpu_custom_call.1} parent=1 // pred_region
      _
    $region21: #{tpu_custom_call.1} parent=1 // pred_fallthru
      _
    // Predicated region
    $region22: #{tpu_custom_call.1} parent=1 // pred_check
      _
    $region23: #{tpu_custom_call.1} parent=1 // pred_check_branch
      %54 = sbr.rel (0) target = $region25
    $region24: #{tpu_custom_call.1} parent=1 // pred_region
      %55 = dma.done [#allocation3], 1024
    $region25: #{tpu_custom_call.1} parent=1 // pred_fallthru
      _
    // Predicated region
    $region26: #{tpu_custom_call.1} parent=1 // pred_check
      _
    $region27: #{tpu_custom_call.1} parent=1 // pred_check_branch
      %57 = sbr.rel (0) target = $region29
    $region28: #{tpu_custom_call.1} parent=1 // pred_region
      %58 = dma.done [#allocation6], 1024
    $region29: #{tpu_custom_call.1} parent=1 // pred_fallthru
      _
    // Predicated region
    $region30: #{tpu_custom_call.1} parent=1 // pred_check
      _
    $region31: #{tpu_custom_call.1} parent=1 // pred_check_branch
      %60 = sbr.rel (0) target = $region33
    $region32: #{tpu_custom_call.1} parent=1 // pred_region
      %61 = dma.done [#allocation6], 1024
    $region33: #{tpu_custom_call.1} parent=1 // pred_fallthru
      _
    %v63 = vld [vmem:[#allocation2] sm:$0x1]
    %v64 = vld [vmem:[#allocation2 + $0x4] sm:$0x1]
    %v65 = vld [vmem:[#allocation2 + $0x8] sm:$0x1]
    %v66 = vld [vmem:[#allocation2 + $0xc] sm:$0x1]
    %v67 = vld [vmem:[#allocation2 + $0x10] sm:$0x1]
    %v68 = vld [vmem:[#allocation2 + $0x14] sm:$0x1]
    %v69 = vld [vmem:[#allocation2 + $0x18] sm:$0x1]
    %v70 = vld [vmem:[#allocation2 + $0x1c] sm:$0x1]
    %v71 = vld [vmem:[#allocation2 + $0x20] sm:$0x1]
    %v72 = vld [vmem:[#allocation2 + $0x24] sm:$0x1]
    %v73 = vld [vmem:[#allocation2 + $0x28] sm:$0x1]
    %v74 = vld [vmem:[#allocation2 + $0x2c] sm:$0x1]
    %v75 = vld [vmem:[#allocation2 + $0x30] sm:$0x1]
    %v76 = vld [vmem:[#allocation2 + $0x34] sm:$0x1]
    %v77 = vld [vmem:[#allocation2 + $0x38] sm:$0x1]
    %v78 = vld [vmem:[#allocation2 + $0x3c] sm:$0x1]
    %v79 = vunpack.c.l.bf16 %v63
    %v80 = vunpack.c.l.bf16 %v64
    %v81 = vunpack.c.l.bf16 %v65
    %v82 = vunpack.c.l.bf16 %v66
    %v83 = vunpack.c.l.bf16 %v67
    %v84 = vunpack.c.l.bf16 %v68
    %v85 = vunpack.c.l.bf16 %v69
    %v86 = vunpack.c.l.bf16 %v70
    %v87 = vunpack.c.l.bf16 %v71
    %v88 = vunpack.c.l.bf16 %v72
    %v89 = vunpack.c.l.bf16 %v73
    %v90 = vunpack.c.l.bf16 %v74
    %v91 = vunpack.c.l.bf16 %v75
    %v92 = vunpack.c.l.bf16 %v76
    %v93 = vunpack.c.l.bf16 %v77
    %v94 = vunpack.c.l.bf16 %v78
    %v111 = vrot.slane %v79, 1
    %v112 = vrot.slane %v80, 1
    %v113 = vrot.slane %v81, 1
    %v114 = vrot.slane %v82, 1
    %v115 = vrot.slane %v83, 1
    %v116 = vrot.slane %v84, 1
    %v117 = vrot.slane %v85, 1
    %v118 = vrot.slane %v86, 1
    %v119 = vrot.slane %v87, 1
    %v120 = vrot.slane %v88, 1
    %v121 = vrot.slane %v89, 1
    %v122 = vrot.slane %v90, 1
    %v123 = vrot.slane %v91, 1
    %v124 = vrot.slane %v92, 1
    %v125 = vrot.slane %v93, 1
    %v126 = vrot.slane %v94, 1
    %v143 = vadd.f32 %v79, %v111
    %v144 = vadd.f32 %v80, %v112
    %v145 = vadd.f32 %v81, %v113
    %v146 = vadd.f32 %v82, %v114
    %v147 = vadd.f32 %v83, %v115
    %v148 = vadd.f32 %v84, %v116
    %v149 = vadd.f32 %v85, %v117
    %v150 = vadd.f32 %v86, %v118
    %v151 = vadd.f32 %v87, %v119
    %v152 = vadd.f32 %v88, %v120
    %v153 = vadd.f32 %v89, %v121
    %v154 = vadd.f32 %v90, %v122
    %v155 = vadd.f32 %v91, %v123
    %v156 = vadd.f32 %v92, %v124
    %v157 = vadd.f32 %v93, %v125
    %v158 = vadd.f32 %v94, %v126
    %v159 = vld [vmem:[#allocation2] sm:$0x2]
    %v160 = vld [vmem:[#allocation2 + $0x4] sm:$0x2]
    %v161 = vld [vmem:[#allocation2 + $0x8] sm:$0x2]
    %v162 = vld [vmem:[#allocation2 + $0xc] sm:$0x2]
    %v163 = vld [vmem:[#allocation2 + $0x10] sm:$0x2]
    %v164 = vld [vmem:[#allocation2 + $0x14] sm:$0x2]
    %v165 = vld [vmem:[#allocation2 + $0x18] sm:$0x2]
    %v166 = vld [vmem:[#allocation2 + $0x1c] sm:$0x2]
    %v167 = vld [vmem:[#allocation2 + $0x20] sm:$0x2]
    %v168 = vld [vmem:[#allocation2 + $0x24] sm:$0x2]
    %v169 = vld [vmem:[#allocation2 + $0x28] sm:$0x2]
    %v170 = vld [vmem:[#allocation2 + $0x2c] sm:$0x2]
    %v171 = vld [vmem:[#allocation2 + $0x30] sm:$0x2]
    %v172 = vld [vmem:[#allocation2 + $0x34] sm:$0x2]
    %v173 = vld [vmem:[#allocation2 + $0x38] sm:$0x2]
    %v174 = vld [vmem:[#allocation2 + $0x3c] sm:$0x2]
    %v175 = vunpack.c.l.bf16 %v159
    %v176 = vunpack.c.l.bf16 %v160
    %v177 = vunpack.c.l.bf16 %v161
    %v178 = vunpack.c.l.bf16 %v162
    %v179 = vunpack.c.l.bf16 %v163
    %v180 = vunpack.c.l.bf16 %v164
    %v181 = vunpack.c.l.bf16 %v165
    %v182 = vunpack.c.l.bf16 %v166
    %v183 = vunpack.c.l.bf16 %v167
    %v184 = vunpack.c.l.bf16 %v168
    %v185 = vunpack.c.l.bf16 %v169
    %v186 = vunpack.c.l.bf16 %v170
    %v187 = vunpack.c.l.bf16 %v171
    %v188 = vunpack.c.l.bf16 %v172
    %v189 = vunpack.c.l.bf16 %v173
    %v190 = vunpack.c.l.bf16 %v174
    %v207 = vrot.slane %v175, 2
    %v208 = vrot.slane %v176, 2
    %v209 = vrot.slane %v177, 2
    %v210 = vrot.slane %v178, 2
    %v211 = vrot.slane %v179, 2
    %v212 = vrot.slane %v180, 2
    %v213 = vrot.slane %v181, 2
    %v214 = vrot.slane %v182, 2
    %v215 = vrot.slane %v183, 2
    %v216 = vrot.slane %v184, 2
    %v217 = vrot.slane %v185, 2
    %v218 = vrot.slane %v186, 2
    %v219 = vrot.slane %v187, 2
    %v220 = vrot.slane %v188, 2
    %v221 = vrot.slane %v189, 2
    %v222 = vrot.slane %v190, 2
    %v239 = vadd.f32 %v143, %v207
    %v240 = vadd.f32 %v144, %v208
    %v241 = vadd.f32 %v145, %v209
    %v242 = vadd.f32 %v146, %v210
    %v243 = vadd.f32 %v147, %v211
    %v244 = vadd.f32 %v148, %v212
    %v245 = vadd.f32 %v149, %v213
    %v246 = vadd.f32 %v150, %v214
    %v247 = vadd.f32 %v151, %v215
    %v248 = vadd.f32 %v152, %v216
    %v249 = vadd.f32 %v153, %v217
    %v250 = vadd.f32 %v154, %v218
    %v251 = vadd.f32 %v155, %v219
    %v252 = vadd.f32 %v156, %v220
    %v253 = vadd.f32 %v157, %v221
    %v254 = vadd.f32 %v158, %v222
    %v255 = vrot.slane %v175, 3
    %v256 = vrot.slane %v176, 3
    %v257 = vrot.slane %v177, 3
    %v258 = vrot.slane %v178, 3
    %v259 = vrot.slane %v179, 3
    %v260 = vrot.slane %v180, 3
    %v261 = vrot.slane %v181, 3
    %v262 = vrot.slane %v182, 3
    %v263 = vrot.slane %v183, 3
    %v264 = vrot.slane %v184, 3
    %v265 = vrot.slane %v185, 3
    %v266 = vrot.slane %v186, 3
    %v267 = vrot.slane %v187, 3
    %v268 = vrot.slane %v188, 3
    %v269 = vrot.slane %v189, 3
    %v270 = vrot.slane %v190, 3
    %v287 = vadd.f32 %v239, %v255
    %v288 = vadd.f32 %v240, %v256
    %v289 = vadd.f32 %v241, %v257
    %v290 = vadd.f32 %v242, %v258
    %v291 = vadd.f32 %v243, %v259
    %v292 = vadd.f32 %v244, %v260
    %v293 = vadd.f32 %v245, %v261
    %v294 = vadd.f32 %v246, %v262
    %v295 = vadd.f32 %v247, %v263
    %v296 = vadd.f32 %v248, %v264
    %v297 = vadd.f32 %v249, %v265
    %v298 = vadd.f32 %v250, %v266
    %v299 = vadd.f32 %v251, %v267
    %v300 = vadd.f32 %v252, %v268
    %v301 = vadd.f32 %v253, %v269
    %v302 = vadd.f32 %v254, %v270
    %v303 = vld [vmem:[#allocation2] sm:$0x4]
    %v304 = vld [vmem:[#allocation2 + $0x4] sm:$0x4]
    %v305 = vld [vmem:[#allocation2 + $0x8] sm:$0x4]
    %v306 = vld [vmem:[#allocation2 + $0xc] sm:$0x4]
    %v307 = vld [vmem:[#allocation2 + $0x10] sm:$0x4]
    %v308 = vld [vmem:[#allocation2 + $0x14] sm:$0x4]
    %v309 = vld [vmem:[#allocation2 + $0x18] sm:$0x4]
    %v310 = vld [vmem:[#allocation2 + $0x1c] sm:$0x4]
    %v311 = vld [vmem:[#allocation2 + $0x20] sm:$0x4]
    %v312 = vld [vmem:[#allocation2 + $0x24] sm:$0x4]
    %v313 = vld [vmem:[#allocation2 + $0x28] sm:$0x4]
    %v314 = vld [vmem:[#allocation2 + $0x2c] sm:$0x4]
    %v315 = vld [vmem:[#allocation2 + $0x30] sm:$0x4]
    %v316 = vld [vmem:[#allocation2 + $0x34] sm:$0x4]
    %v317 = vld [vmem:[#allocation2 + $0x38] sm:$0x4]
    %v318 = vld [vmem:[#allocation2 + $0x3c] sm:$0x4]
    %v319 = vunpack.c.l.bf16 %v303
    %v320 = vunpack.c.l.bf16 %v304
    %v321 = vunpack.c.l.bf16 %v305
    %v322 = vunpack.c.l.bf16 %v306
    %v323 = vunpack.c.l.bf16 %v307
    %v324 = vunpack.c.l.bf16 %v308
    %v325 = vunpack.c.l.bf16 %v309
    %v326 = vunpack.c.l.bf16 %v310
    %v327 = vunpack.c.l.bf16 %v311
    %v328 = vunpack.c.l.bf16 %v312
    %v329 = vunpack.c.l.bf16 %v313
    %v330 = vunpack.c.l.bf16 %v314
    %v331 = vunpack.c.l.bf16 %v315
    %v332 = vunpack.c.l.bf16 %v316
    %v333 = vunpack.c.l.bf16 %v317
    %v334 = vunpack.c.l.bf16 %v318
    %v351 = vrot.slane %v319, 4
    %v352 = vrot.slane %v320, 4
    %v353 = vrot.slane %v321, 4
    %v354 = vrot.slane %v322, 4
    %v355 = vrot.slane %v323, 4
    %v356 = vrot.slane %v324, 4
    %v357 = vrot.slane %v325, 4
    %v358 = vrot.slane %v326, 4
    %v359 = vrot.slane %v327, 4
    %v360 = vrot.slane %v328, 4
    %v361 = vrot.slane %v329, 4
    %v362 = vrot.slane %v330, 4
    %v363 = vrot.slane %v331, 4
    %v364 = vrot.slane %v332, 4
    %v365 = vrot.slane %v333, 4
    %v366 = vrot.slane %v334, 4
    %v383 = vadd.f32 %v287, %v351
    %v384 = vadd.f32 %v288, %v352
    %v385 = vadd.f32 %v289, %v353
    %v386 = vadd.f32 %v290, %v354
    %v387 = vadd.f32 %v291, %v355
    %v388 = vadd.f32 %v292, %v356
    %v389 = vadd.f32 %v293, %v357
    %v390 = vadd.f32 %v294, %v358
    %v391 = vadd.f32 %v295, %v359
    %v392 = vadd.f32 %v296, %v360
    %v393 = vadd.f32 %v297, %v361
    %v394 = vadd.f32 %v298, %v362
    %v395 = vadd.f32 %v299, %v363
    %v396 = vadd.f32 %v300, %v364
    %v397 = vadd.f32 %v301, %v365
    %v398 = vadd.f32 %v302, %v366
    %v399 = vrot.slane %v319, 5
    %v400 = vrot.slane %v320, 5
    %v401 = vrot.slane %v321, 5
    %v402 = vrot.slane %v322, 5
    %v403 = vrot.slane %v323, 5
    %v404 = vrot.slane %v324, 5
    %v405 = vrot.slane %v325, 5
    %v406 = vrot.slane %v326, 5
    %v407 = vrot.slane %v327, 5
    %v408 = vrot.slane %v328, 5
    %v409 = vrot.slane %v329, 5
    %v410 = vrot.slane %v330, 5
    %v411 = vrot.slane %v331, 5
    %v412 = vrot.slane %v332, 5
    %v413 = vrot.slane %v333, 5
    %v414 = vrot.slane %v334, 5
    %v431 = vadd.f32 %v383, %v399
    %v432 = vadd.f32 %v384, %v400
    %v433 = vadd.f32 %v385, %v401
    %v434 = vadd.f32 %v386, %v402
    %v435 = vadd.f32 %v387, %v403
    %v436 = vadd.f32 %v388, %v404
    %v437 = vadd.f32 %v389, %v405
    %v438 = vadd.f32 %v390, %v406
    %v439 = vadd.f32 %v391, %v407
    %v440 = vadd.f32 %v392, %v408
    %v441 = vadd.f32 %v393, %v409
    %v442 = vadd.f32 %v394, %v410
    %v443 = vadd.f32 %v395, %v411
    %v444 = vadd.f32 %v396, %v412
    %v445 = vadd.f32 %v397, %v413
    %v446 = vadd.f32 %v398, %v414
    %v447 = vld [vmem:[#allocation2] sm:$0x8]
    %v448 = vld [vmem:[#allocation2 + $0x4] sm:$0x8]
    %v449 = vld [vmem:[#allocation2 + $0x8] sm:$0x8]
    %v450 = vld [vmem:[#allocation2 + $0xc] sm:$0x8]
    %v451 = vld [vmem:[#allocation2 + $0x10] sm:$0x8]
    %v452 = vld [vmem:[#allocation2 + $0x14] sm:$0x8]
    %v453 = vld [vmem:[#allocation2 + $0x18] sm:$0x8]
    %v454 = vld [vmem:[#allocation2 + $0x1c] sm:$0x8]
    %v455 = vld [vmem:[#allocation2 + $0x20] sm:$0x8]
    %v456 = vld [vmem:[#allocation2 + $0x24] sm:$0x8]
    %v457 = vld [vmem:[#allocation2 + $0x28] sm:$0x8]
    %v458 = vld [vmem:[#allocation2 + $0x2c] sm:$0x8]
    %v459 = vld [vmem:[#allocation2 + $0x30] sm:$0x8]
    %v460 = vld [vmem:[#allocation2 + $0x34] sm:$0x8]
    %v461 = vld [vmem:[#allocation2 + $0x38] sm:$0x8]
    %v462 = vld [vmem:[#allocation2 + $0x3c] sm:$0x8]
    %v463 = vunpack.c.l.bf16 %v447
    %v464 = vunpack.c.l.bf16 %v448
    %v465 = vunpack.c.l.bf16 %v449
    %v466 = vunpack.c.l.bf16 %v450
    %v467 = vunpack.c.l.bf16 %v451
    %v468 = vunpack.c.l.bf16 %v452
    %v469 = vunpack.c.l.bf16 %v453
    %v470 = vunpack.c.l.bf16 %v454
    %v471 = vunpack.c.l.bf16 %v455
    %v472 = vunpack.c.l.bf16 %v456
    %v473 = vunpack.c.l.bf16 %v457
    %v474 = vunpack.c.l.bf16 %v458
    %v475 = vunpack.c.l.bf16 %v459
    %v476 = vunpack.c.l.bf16 %v460
    %v477 = vunpack.c.l.bf16 %v461
    %v478 = vunpack.c.l.bf16 %v462
    %v495 = vrot.slane %v463, 6
    %v496 = vrot.slane %v464, 6
    %v497 = vrot.slane %v465, 6
    %v498 = vrot.slane %v466, 6
    %v499 = vrot.slane %v467, 6
    %v500 = vrot.slane %v468, 6
    %v501 = vrot.slane %v469, 6
    %v502 = vrot.slane %v470, 6
    %v503 = vrot.slane %v471, 6
    %v504 = vrot.slane %v472, 6
    %v505 = vrot.slane %v473, 6
    %v506 = vrot.slane %v474, 6
    %v507 = vrot.slane %v475, 6
    %v508 = vrot.slane %v476, 6
    %v509 = vrot.slane %v477, 6
    %v510 = vrot.slane %v478, 6
    %v527 = vadd.f32 %v431, %v495
    %v528 = vadd.f32 %v432, %v496
    %v529 = vadd.f32 %v433, %v497
    %v530 = vadd.f32 %v434, %v498
    %v531 = vadd.f32 %v435, %v499
    %v532 = vadd.f32 %v436, %v500
    %v533 = vadd.f32 %v437, %v501
    %v534 = vadd.f32 %v438, %v502
    %v535 = vadd.f32 %v439, %v503
    %v536 = vadd.f32 %v440, %v504
    %v537 = vadd.f32 %v441, %v505
    %v538 = vadd.f32 %v442, %v506
    %v539 = vadd.f32 %v443, %v507
    %v540 = vadd.f32 %v444, %v508
    %v541 = vadd.f32 %v445, %v509
    %v542 = vadd.f32 %v446, %v510
    %v543 = vrot.slane %v463, 7
    %v544 = vrot.slane %v464, 7
    %v545 = vrot.slane %v465, 7
    %v546 = vrot.slane %v466, 7
    %v547 = vrot.slane %v467, 7
    %v548 = vrot.slane %v468, 7
    %v549 = vrot.slane %v469, 7
    %v550 = vrot.slane %v470, 7
    %v551 = vrot.slane %v471, 7
    %v552 = vrot.slane %v472, 7
    %v553 = vrot.slane %v473, 7
    %v554 = vrot.slane %v474, 7
    %v555 = vrot.slane %v475, 7
    %v556 = vrot.slane %v476, 7
    %v557 = vrot.slane %v477, 7
    %v558 = vrot.slane %v478, 7
    %v575 = vadd.f32 %v527, %v543
    %v576 = vadd.f32 %v528, %v544
    %v577 = vadd.f32 %v529, %v545
    %v578 = vadd.f32 %v530, %v546
    %v579 = vadd.f32 %v531, %v547
    %v580 = vadd.f32 %v532, %v548
    %v581 = vadd.f32 %v533, %v549
    %v582 = vadd.f32 %v534, %v550
    %v583 = vadd.f32 %v535, %v551
    %v584 = vadd.f32 %v536, %v552
    %v585 = vadd.f32 %v537, %v553
    %v586 = vadd.f32 %v538, %v554
    %v587 = vadd.f32 %v539, %v555
    %v588 = vadd.f32 %v540, %v556
    %v589 = vadd.f32 %v541, %v557
    %v590 = vadd.f32 %v542, %v558
    %v591 = vpack.c.bf16 %v575, %v575
    %v592 = vpack.c.bf16 %v576, %v576
    %v593 = vpack.c.bf16 %v577, %v577
    %v594 = vpack.c.bf16 %v578, %v578
    %v595 = vpack.c.bf16 %v579, %v579
    %v596 = vpack.c.bf16 %v580, %v580
    %v597 = vpack.c.bf16 %v581, %v581
    %v598 = vpack.c.bf16 %v582, %v582
    %v599 = vpack.c.bf16 %v583, %v583
    %v600 = vpack.c.bf16 %v584, %v584
    %v601 = vpack.c.bf16 %v585, %v585
    %v602 = vpack.c.bf16 %v586, %v586
    %v603 = vpack.c.bf16 %v587, %v587
    %v604 = vpack.c.bf16 %v588, %v588
    %v605 = vpack.c.bf16 %v589, %v589
    %v606 = vpack.c.bf16 %v590, %v590
    %v607 = vld [vmem:[#allocation5] sm:$0xf]
    %v608 = vld [vmem:[#allocation5 + $0x4] sm:$0xf]
    %v609 = vld [vmem:[#allocation5 + $0x8] sm:$0xf]
    %v610 = vld [vmem:[#allocation5 + $0xc] sm:$0xf]
    %v611 = vld [vmem:[#allocation5 + $0x10] sm:$0xf]
    %v612 = vld [vmem:[#allocation5 + $0x14] sm:$0xf]
    %v613 = vld [vmem:[#allocation5 + $0x18] sm:$0xf]
    %v614 = vld [vmem:[#allocation5 + $0x1c] sm:$0xf]
    %v615 = vld [vmem:[#allocation5 + $0x20] sm:$0xf]
    %v616 = vld [vmem:[#allocation5 + $0x24] sm:$0xf]
    %v617 = vld [vmem:[#allocation5 + $0x28] sm:$0xf]
    %v618 = vld [vmem:[#allocation5 + $0x2c] sm:$0xf]
    %v619 = vld [vmem:[#allocation5 + $0x30] sm:$0xf]
    %v620 = vld [vmem:[#allocation5 + $0x34] sm:$0xf]
    %v621 = vld [vmem:[#allocation5 + $0x38] sm:$0xf]
    %v622 = vld [vmem:[#allocation5 + $0x3c] sm:$0xf]
    %v623 = vld [vmem:[%s2] sm:$0x1]
    %v625 = vlaneseq
    %v626 = vshrl.u32 %v625, 7
    %v627 = vsub.s32 0, %v626
    %v628 = vrot.slane %v623, %v627
    %v646 = vunpack.c.l.b16 %v591
    %v647 = vunpack.c.l.b16 %v592
    %v648 = vunpack.c.l.b16 %v593
    %v649 = vunpack.c.l.b16 %v594
    %v650 = vunpack.c.l.b16 %v595
    %v651 = vunpack.c.l.b16 %v596
    %v652 = vunpack.c.l.b16 %v597
    %v653 = vunpack.c.l.b16 %v598
    %v654 = vunpack.c.l.b16 %v599
    %v655 = vunpack.c.l.b16 %v600
    %v656 = vunpack.c.l.b16 %v601
    %v657 = vunpack.c.l.b16 %v602
    %v658 = vunpack.c.l.b16 %v603
    %v659 = vunpack.c.l.b16 %v604
    %v660 = vunpack.c.l.b16 %v605
    %v661 = vunpack.c.l.b16 %v606
    %v662 = vrot.slane %v647, 7
    %vm663 = vcmask 1041409
    %v664 = vsel %vm663, %v662, %v646
    %v665 = vrot.slane %v648, 6
    %vm666 = vcmask 1042434
    %v667 = vsel %vm666, %v665, %v664
    %v668 = vrot.slane %v649, 5
    %vm669 = vcmask 1043459
    %v670 = vsel %vm669, %v668, %v667
    %v671 = vrot.slane %v650, 4
    %vm672 = vcmask 1044484
    %v673 = vsel %vm672, %v671, %v670
    %v674 = vrot.slane %v651, 3
    %vm675 = vcmask 1045509
    %v676 = vsel %vm675, %v674, %v673
    %v677 = vrot.slane %v652, 2
    %vm678 = vcmask 1046534
    %v679 = vsel %vm678, %v677, %v676
    %v680 = vrot.slane %v653, 1
    %vm681 = vcmask 1047559
    %v682 = vsel %vm681, %v680, %v679
    %v683 = vrot.slane %v655, 7
    %v684 = vsel %vm663, %v683, %v654
    %v685 = vrot.slane %v656, 6
    %v686 = vsel %vm666, %v685, %v684
    %v687 = vrot.slane %v657, 5
    %v688 = vsel %vm669, %v687, %v686
    %v689 = vrot.slane %v658, 4
    %v690 = vsel %vm672, %v689, %v688
    %v691 = vrot.slane %v659, 3
    %v692 = vsel %vm675, %v691, %v690
    %v693 = vrot.slane %v660, 2
    %v694 = vsel %vm678, %v693, %v692
    %v695 = vrot.slane %v661, 1
    %v696 = vsel %vm681, %v695, %v694
    %v697 = vpack.c.b16 %v696, %v682
    %v715 = vunpack.c.l.b16 %v607
    %v716 = vunpack.c.l.b16 %v608
    %v717 = vunpack.c.l.b16 %v609
    %v718 = vunpack.c.l.b16 %v610
    %v719 = vunpack.c.l.b16 %v611
    %v720 = vunpack.c.l.b16 %v612
    %v721 = vunpack.c.l.b16 %v613
    %v722 = vunpack.c.l.b16 %v614
    %v723 = vunpack.c.l.b16 %v615
    %v724 = vunpack.c.l.b16 %v616
    %v725 = vunpack.c.l.b16 %v617
    %v726 = vunpack.c.l.b16 %v618
    %v727 = vunpack.c.l.b16 %v619
    %v728 = vunpack.c.l.b16 %v620
    %v729 = vunpack.c.l.b16 %v621
    %v730 = vunpack.c.l.b16 %v622
    %v731 = vpack.c.b16 %v716, %v715
    %v732 = vpack.c.b16 %v718, %v717
    %v733 = vpack.c.b16 %v720, %v719
    %v734 = vpack.c.b16 %v722, %v721
    %v735 = vpack.c.b16 %v724, %v723
    %v736 = vpack.c.b16 %v726, %v725
    %v737 = vpack.c.b16 %v728, %v727
    %v738 = vpack.c.b16 %v730, %v729
    %747 = vmatprep.subr.bf16.mxu0 0
    %748 = vmatpush1.bf16.xpose.msra.mxu0 %v731
    %749 = vmatprep.subr.bf16.mxu0 0
    %750 = vmatpush1.bf16.xpose.msra.mxu0 %v732
    %751 = vmatprep.subr.bf16.mxu0 0
    %752 = vmatpush1.bf16.xpose.msra.mxu0 %v733
    %753 = vmatprep.subr.bf16.mxu0 0
    %754 = vmatpush1.bf16.xpose.msra.mxu0 %v734
    %755 = vmatprep.subr.bf16.mxu0 0
    %756 = vmatpush1.bf16.xpose.msra.mxu0 %v735
    %757 = vmatprep.subr.bf16.mxu0 0
    %758 = vmatpush1.bf16.xpose.msra.mxu0 %v736
    %759 = vmatprep.subr.bf16.mxu0 0
    %760 = vmatpush1.bf16.xpose.msra.mxu0 %v737
    %761 = vmatprep.subr.bf16.mxu0 0
    %762 = vmatpush1.bf16.xpose.msra.mxu0 %v738
    %763 = vmatprep.subr.bf16.mxu0 0
    %764 = vmatpush1.bf16.xpose.msra.mxu0 0
    %765 = vmatprep.subr.bf16.mxu0 0
    %766 = vmatpush1.bf16.xpose.msra.mxu0 0
    %767 = vmatprep.subr.bf16.mxu0 0
    %768 = vmatpush1.bf16.xpose.msra.mxu0 0
    %769 = vmatprep.subr.bf16.mxu0 0
    %770 = vmatpush1.bf16.xpose.msra.mxu0 0
    %771 = vmatprep.subr.bf16.mxu0 0
    %772 = vmatpush1.bf16.xpose.msra.mxu0 0
    %773 = vmatprep.subr.bf16.mxu0 0
    %774 = vmatpush1.bf16.xpose.msra.mxu0 0
    %775 = vmatprep.subr.bf16.mxu0 0
    %776 = vmatpush1.bf16.xpose.msra.mxu0 0
    %777 = vmatprep.subr.bf16.mxu0 0
    %778 = vmatpush1.bf16.xpose.msra.mxu0 0
    %779 = vmatprep.mubr.bf16.mxu0 0
    %780 = vmatmul.mubr.bf16.gmra.mrb[0].mxu0 %v697
    %v781 = vpop.f32.mrb[0].mxu0
    %v782 = vadd.f32 %v628, %v781
    %v783 = vpop.f32.mrb[0].mxu0
    %v784 = vpop.f32.mrb[0].mxu0
    %v785 = vadd.f32 %v628, %v784
    %v786 = vpop.f32.mrb[0].mxu0
    %787 = vdwg.mxu0
    %v788 = vmax.f32 %v782, 0.0
    %v789 = vmax.f32 %v785, 0.0
    %v790 = vpack.c.bf16 %v789, %v788
    %v791 = vld [vmem:[#allocation7] sm:$0xf]
    %v792 = vld [vmem:[#allocation7 + $0x4] sm:$0xf]
    %v793 = vld [vmem:[#allocation7 + $0x8] sm:$0xf]
    %v794 = vld [vmem:[#allocation7 + $0xc] sm:$0xf]
    %v795 = vld [vmem:[#allocation7 + $0x10] sm:$0xf]
    %v796 = vld [vmem:[#allocation7 + $0x14] sm:$0xf]
    %v797 = vld [vmem:[#allocation7 + $0x18] sm:$0xf]
    %v798 = vld [vmem:[#allocation7 + $0x1c] sm:$0xf]
    %v799 = vld [vmem:[#allocation7 + $0x20] sm:$0xf]
    %v800 = vld [vmem:[#allocation7 + $0x24] sm:$0xf]
    %v801 = vld [vmem:[#allocation7 + $0x28] sm:$0xf]
    %v802 = vld [vmem:[#allocation7 + $0x2c] sm:$0xf]
    %v803 = vld [vmem:[#allocation7 + $0x30] sm:$0xf]
    %v804 = vld [vmem:[#allocation7 + $0x34] sm:$0xf]
    %v805 = vld [vmem:[#allocation7 + $0x38] sm:$0xf]
    %v806 = vld [vmem:[#allocation7 + $0x3c] sm:$0xf]
    %v807 = vld [vmem:[%s4] sm:$0x1]
    %v809 = vlaneseq
    %v810 = vshrl.u32 %v809, 7
    %v811 = vsub.s32 0, %v810
    %v812 = vrot.slane %v807, %v811
    %v830 = vunpack.c.l.b16 %v791
    %v831 = vunpack.c.l.b16 %v792
    %v832 = vunpack.c.l.b16 %v793
    %v833 = vunpack.c.l.b16 %v794
    %v834 = vunpack.c.l.b16 %v795
    %v835 = vunpack.c.l.b16 %v796
    %v836 = vunpack.c.l.b16 %v797
    %v837 = vunpack.c.l.b16 %v798
    %v838 = vunpack.c.l.b16 %v799
    %v839 = vunpack.c.l.b16 %v800
    %v840 = vunpack.c.l.b16 %v801
    %v841 = vunpack.c.l.b16 %v802
    %v842 = vunpack.c.l.b16 %v803
    %v843 = vunpack.c.l.b16 %v804
    %v844 = vunpack.c.l.b16 %v805
    %v845 = vunpack.c.l.b16 %v806
    %v846 = vpack.c.b16 %v831, %v830
    %v847 = vpack.c.b16 %v833, %v832
    %v848 = vpack.c.b16 %v835, %v834
    %v849 = vpack.c.b16 %v837, %v836
    %v850 = vpack.c.b16 %v839, %v838
    %v851 = vpack.c.b16 %v841, %v840
    %v852 = vpack.c.b16 %v843, %v842
    %v853 = vpack.c.b16 %v845, %v844
    %862 = vmatprep.subr.bf16.mxu0 0
    %863 = vmatpush1.bf16.xpose.msra.mxu0 %v846
    %864 = vmatprep.subr.bf16.mxu0 0
    %865 = vmatpush1.bf16.xpose.msra.mxu0 %v847
    %866 = vmatprep.subr.bf16.mxu0 0
    %867 = vmatpush1.bf16.xpose.msra.mxu0 %v848
    %868 = vmatprep.subr.bf16.mxu0 0
    %869 = vmatpush1.bf16.xpose.msra.mxu0 %v849
    %870 = vmatprep.subr.bf16.mxu0 0
    %871 = vmatpush1.bf16.xpose.msra.mxu0 %v850
    %872 = vmatprep.subr.bf16.mxu0 0
    %873 = vmatpush1.bf16.xpose.msra.mxu0 %v851
    %874 = vmatprep.subr.bf16.mxu0 0
    %875 = vmatpush1.bf16.xpose.msra.mxu0 %v852
    %876 = vmatprep.subr.bf16.mxu0 0
    %877 = vmatpush1.bf16.xpose.msra.mxu0 %v853
    %878 = vmatprep.subr.bf16.mxu0 0
    %879 = vmatpush1.bf16.xpose.msra.mxu0 0
    %880 = vmatprep.subr.bf16.mxu0 0
    %881 = vmatpush1.bf16.xpose.msra.mxu0 0
    %882 = vmatprep.subr.bf16.mxu0 0
    %883 = vmatpush1.bf16.xpose.msra.mxu0 0
    %884 = vmatprep.subr.bf16.mxu0 0
    %885 = vmatpush1.bf16.xpose.msra.mxu0 0
    %886 = vmatprep.subr.bf16.mxu0 0
    %887 = vmatpush1.bf16.xpose.msra.mxu0 0
    %888 = vmatprep.subr.bf16.mxu0 0
    %889 = vmatpush1.bf16.xpose.msra.mxu0 0
    %890 = vmatprep.subr.bf16.mxu0 0
    %891 = vmatpush1.bf16.xpose.msra.mxu0 0
    %892 = vmatprep.subr.bf16.mxu0 0
    %893 = vmatpush1.bf16.xpose.msra.mxu0 0
    %894 = vmatprep.mubr.bf16.mxu0 0
    %895 = vmatmul.mubr.bf16.gmra.mrb[0].mxu0 %v790
    %v896 = vpop.f32.mrb[0].mxu0
    %v897 = vadd.f32 %v812, %v896
    %v898 = vpop.f32.mrb[0].mxu0
    %v899 = vpop.f32.mrb[0].mxu0
    %v900 = vadd.f32 %v812, %v899
    %v901 = vpop.f32.mrb[0].mxu0
    %902 = vdwg.mxu0
    %903 = vmax.xlane.f32.xlu0 %v897
    %v904 = vpop.xlane.xlu0 %903
    %905 = vmax.xlane.f32.xlu0 %v900
    %v906 = vpop.xlane.xlu0 %905
    %v907 = vsub.f32 %v897, %v904
    %v908 = vsub.f32 %v900, %v906
    %v909 = vmul.f32 %v907, 1.442695
    %v910 = vpow.pop %v909
    %v911 = vmul.f32 %v908, 1.442695
    %v912 = vpow.pop %v911
    %913 = vadd.xlane.f32.xlu0 %v910
    %v914 = vpop.xlane.xlu0 %913
    %915 = vadd.xlane.f32.xlu0 %v912
    %v916 = vpop.xlane.xlu0 %915
    %v917 = vrcp.pop %v914
    %v918 = vmul.f32 %v910, %v917
    %v919 = vrcp.pop %v916
    %v920 = vmul.f32 %v912, %v919
    %921 = vst [vmem:[#allocation8] sm:$0xff] %v918
    %922 = vst [vmem:[#allocation8 + $0x8] sm:$0xff] %v920
    // Predicated region
    $region34: #{tpu_custom_call.1} parent=1 // pred_check
      _
    $region35: #{tpu_custom_call.1} parent=1 // pred_check_branch
      %924 = sbr.rel (0) target = $region37
    $region36: #{tpu_custom_call.1} parent=1 // pred_region
      %s926 = ssub.s32 256, 256
      %927 = vsyncadd [#allocation4], %s926
      %s928 = sshll.u32 [#allocation8], 4
      %s929 = int_to_ptr.vmem [resolvable:$true] %s928
      %934 = dma.vmem_to_hbm [thread:$0]  %s929, 256, %s5, [#allocation4], 128, 128, 8
    $region37: #{tpu_custom_call.1} parent=1 // pred_fallthru
      _
    // Predicated region
    $region38: #{tpu_custom_call.1} parent=1 // pred_check
      _
    $region39: #{tpu_custom_call.1} parent=1 // pred_check_branch
      %936 = sbr.rel (0) target = $region41
    $region40: #{tpu_custom_call.1} parent=1 // pred_region
      %937 = dma.done [#allocation4], 256
    $region41: #{tpu_custom_call.1} parent=1 // pred_fallthru
      _
    %938 = vsyncpa [#allocation3], 1
    %939 = vsyncpa [#allocation6], 1
    %940 = vsyncpa [#allocation4], 1

</llo_original>
